<compile_context>
chip_gen: v6e
topology: v6e:2x2x1
jax: 0.10.0
libtpu: 0.0.40
codegen_flags: <defaults>
</compile_context>

<pallas_src>
import functools

import jax
import jax.numpy as jnp
from jax.experimental import pallas as pl
from jax.experimental.pallas import tpu as pltpu

LANE = 128


def _iou_partial_kernel(pred_ref, label_ref, inter_ref, union_ref, *,
                        steps_per_split, ts, s_valid, needs_mask):
    """Grid = (split, k): split is 'parallel' (megacore), k walks chunk blocks.

    pred_ref/label_ref : (B, TS, 128) blocks of the (B, S, 128) inputs.
    inter_ref/union_ref: (B, 128) per-split lane-wide partial sums, resident
    across the k axis (accumulator pattern). Cross-lane reduce + mean happen
    in the wrapper.
    """
    k = pl.program_id(1)

    @pl.when(k == 0)
    def _init():
        inter_ref[...] = jnp.zeros_like(inter_ref)
        union_ref[...] = jnp.zeros_like(union_ref)

    p = pred_ref[...].astype(jnp.float32)   # (B, TS, 128)
    l = label_ref[...].astype(jnp.float32)  # (B, TS, 128)

    inter_c = p * l
    union_c = p * p + l

    if needs_mask:
        # Mask chunks past the true chunk count S (partial last block and/or
        # duplicated clamped blocks of an uneven split).
        sp = pl.program_id(0)
        blk = sp * steps_per_split + k
        chunk = blk * ts + jax.lax.broadcasted_iota(jnp.int32, (1, ts, LANE), 1)
        valid = chunk < s_valid
        inter_c = jnp.where(valid, inter_c, 0.0)
        union_c = jnp.where(valid, union_c, 0.0)

    # Cheap sublane(chunk)-axis reduce per step; defer the cross-lane reduce.
    inter_ref[...] += jnp.sum(inter_c, axis=1)   # (B, 128)
    union_ref[...] += jnp.sum(union_c, axis=1)   # (B, 128)


@functools.partial(jax.jit, static_argnames=("num_splits",))
def iou_loss(pred, label, *, num_splits=2):
    """pred, label: (B, C, H, W) arrays (any float dtype). Returns scalar f32."""
    b = pred.shape[0]
    pred2d = pred.reshape(b, -1)
    label2d = label.reshape(b, -1)
    n = pred2d.shape[1]

    # Lane-dense layout (B, S, 128). Only pad when N is not a multiple of 128.
    if n % LANE != 0:
        # TODO(synk): copy-free tail handling for N % 128 != 0 would need a 2-D
        # lane mask on an un-reshaped layout; this pad is a one-off fallback.
        pad = LANE - (n % LANE)
        pred2d = jnp.pad(pred2d, ((0, 0), (0, pad)))
        label2d = jnp.pad(label2d, ((0, 0), (0, pad)))
    s = pred2d.shape[1] // LANE
    pred3d = pred2d.reshape(b, s, LANE)
    label3d = label2d.reshape(b, s, LANE)

    itemsize = jnp.dtype(pred3d.dtype).itemsize

    # Generation-aware VMEM budget:
    #   resident ~= 2 inputs * 2 pipeline buffers * (B * TS * 128 * itemsize)
    try:
        vmem_cap = int(pltpu.get_tpu_info().vmem_capacity_bytes)
    except Exception:
        vmem_cap = 64 * 1024 * 1024  # conservative (v7x per-TC VMEM)
    input_budget = min(vmem_cap // 4, 32 * 1024 * 1024)  # total for the 4 input buffers
    ts_cap = max(8, input_budget // (4 * b * LANE * itemsize))
    if ts_cap >= s or s <= 8:
        ts = s                                   # whole chunk axis in one block
    else:
        ts = max(8, (min(ts_cap, s) // 8) * 8)   # multiple of 8 (sublane tiling)

    n_blocks = pl.cdiv(s, ts)
    splits = max(1, min(num_splits, n_blocks))   # 2-way split feeds both v7x TCs
    steps = pl.cdiv(n_blocks, splits)
    exact = (splits * steps == n_blocks) and (n_blocks * ts == s)
    needs_mask = not exact
    last_blk = n_blocks - 1

    if exact:
        def in_map(sp, k):
            return (0, sp * steps + k, 0)
    else:
        # Clamp so duplicated tail steps re-read the last valid block (their
        # contribution is zeroed by the in-kernel mask).
        def in_map(sp, k):
            return (0, jnp.minimum(sp * steps + k, last_blk), 0)

    out_map = lambda sp, k: (sp, 0, 0)

    block_bytes = b * ts * LANE * itemsize
    vmem_limit = int(min(max(4 * block_bytes + (8 << 20), 32 << 20),
                         (vmem_cap * 3) // 4))

    kernel = functools.partial(
        _iou_partial_kernel,
        steps_per_split=steps, ts=ts, s_valid=s, needs_mask=needs_mask)

    inter_p, union_p = pl.pallas_call(
        kernel,
        out_shape=(jax.ShapeDtypeStruct((splits, b, LANE), jnp.float32),
                   jax.ShapeDtypeStruct((splits, b, LANE), jnp.float32)),
        grid_spec=pltpu.PrefetchScalarGridSpec(
            num_scalar_prefetch=0,
            grid=(splits, steps),
            in_specs=[
                pl.BlockSpec((b, ts, LANE), in_map),
                pl.BlockSpec((b, ts, LANE), in_map),
            ],
            out_specs=[
                pl.BlockSpec((None, b, LANE), out_map),
                pl.BlockSpec((None, b, LANE), out_map),
            ],
        ),
        compiler_params=pltpu.CompilerParams(
            dimension_semantics=("parallel", "arbitrary"),
            vmem_limit_bytes=vmem_limit,
        ),
    )(pred3d, label3d)

    # Tiny finalization in XLA: combine splits, cross-lane reduce, mean.
    inter = jnp.sum(inter_p, axis=(0, 2))            # (B,)
    union = jnp.sum(union_p, axis=(0, 2)) - inter    # (B,)
    return jnp.mean(1.0 - inter / union)


def iou_loss_ref(pred, label):
    """Pure-JAX reference mirroring the PyTorch module."""
    b = pred.shape[0]
    p = pred.reshape(b, -1).astype(jnp.float32)
    l = label.reshape(b, -1).astype(jnp.float32)
    inter = jnp.sum(p * l, axis=-1)
    union = jnp.sum(p * p + l, axis=-1) - inter
    return jnp.mean(1.0 - inter / union)


if __name__ == "__main__":
    key = jax.random.PRNGKey(0)
    k1, k2 = jax.random.split(key)

    B, C, H, W = 2, 4, 16, 16
    # pred ~ sigmoid-like probabilities, label ~ binary mask
    pred = jax.nn.sigmoid(jax.random.normal(k1, (B, C, H, W), dtype=jnp.float32))
    label = (jax.random.uniform(k2, (B, C, H, W)) > 0.5).astype(jnp.float32)

    out = iou_loss(pred, label)
    jax.block_until_ready(out)

    ref = iou_loss_ref(pred, label)
    assert jnp.allclose(out, ref, atol=1e-5, rtol=1e-5), (out, ref)

    print("KERNEL_OK")
</pallas_src>

<mosaic_0001>
module attributes {stable_mosaic.version = 11 : i64} {
  func.func @_iou_partial_kernel(%arg0: i32, %arg1: i32, %arg2: memref<2x8x128xf32, #tpu.memory_space<vmem>>, %arg3: memref<2x8x128xf32, #tpu.memory_space<vmem>>, %arg4: memref<1x2x128xf32, #tpu.memory_space<vmem>>, %arg5: memref<1x2x128xf32, #tpu.memory_space<vmem>>) attributes {dimension_semantics = [#tpu.dimension_semantics<parallel>, #tpu.dimension_semantics<arbitrary>], iteration_bounds = array<i64: 1, 1>, scalar_prefetch = 0 : i64, scratch_operands = 0 : i64, tpu.core_type = #tpu.core_type<tc>, window_params = [{transform_indices = @transform_0, window_bounds = array<i64: 2, 8, 128>}, {transform_indices = @transform_1, window_bounds = array<i64: 2, 8, 128>}, {transform_indices = @transform_2, window_bounds = array<i64: 1, 2, 128>}, {transform_indices = @transform_3, window_bounds = array<i64: 1, 2, 128>}]} {
    %c0_i32 = arith.constant 0 : i32
    %0 = arith.cmpi eq, %arg1, %c0_i32 : i32
    %1 = arith.extui %0 : i1 to i32
    %c0_i32_0 = arith.constant 0 : i32
    %2 = arith.cmpi ne, %1, %c0_i32_0 : i32
    scf.if %2 {
      %cst_19 = arith.constant 0.000000e+00 : f32
      %22 = vector.broadcast %cst_19 : f32 to vector<2x128xf32>
      %c0_20 = arith.constant 0 : index
      %c0_21 = arith.constant 0 : index
      %c0_22 = arith.constant 0 : index
      %23 = vector.load %arg4[%c0_20, %c0_21, %c0_22] : memref<1x2x128xf32, #tpu.memory_space<vmem>>, vector<1x2x128xf32>
      %24 = vector.shape_cast %23 : vector<1x2x128xf32> to vector<2x128xf32>
      %25 = vector.shape_cast %22 : vector<2x128xf32> to vector<1x2x128xf32>
      tpu.vector_store %arg4[%c0_20, %c0_21, %c0_22], %25 {strides = array<i32>} : memref<1x2x128xf32, #tpu.memory_space<vmem>>, vector<1x2x128xf32>,
      %cst_23 = arith.constant 0.000000e+00 : f32
      %26 = vector.broadcast %cst_23 : f32 to vector<2x128xf32>
      %c0_24 = arith.constant 0 : index
      %c0_25 = arith.constant 0 : index
      %c0_26 = arith.constant 0 : index
      %27 = vector.load %arg5[%c0_24, %c0_25, %c0_26] : memref<1x2x128xf32, #tpu.memory_space<vmem>>, vector<1x2x128xf32>
      %28 = vector.shape_cast %27 : vector<1x2x128xf32> to vector<2x128xf32>
      %29 = vector.shape_cast %26 : vector<2x128xf32> to vector<1x2x128xf32>
      tpu.vector_store %arg5[%c0_24, %c0_25, %c0_26], %29 {strides = array<i32>} : memref<1x2x128xf32, #tpu.memory_space<vmem>>, vector<1x2x128xf32>,
    } else {
    }
    %c0 = arith.constant 0 : index
    %c0_1 = arith.constant 0 : index
    %c0_2 = arith.constant 0 : index
    %3 = vector.load %arg2[%c0, %c0_1, %c0_2] : memref<2x8x128xf32, #tpu.memory_space<vmem>>, vector<2x8x128xf32>
    %c0_3 = arith.constant 0 : index
    %c0_4 = arith.constant 0 : index
    %c0_5 = arith.constant 0 : index
    %4 = vector.load %arg3[%c0_3, %c0_4, %c0_5] : memref<2x8x128xf32, #tpu.memory_space<vmem>>, vector<2x8x128xf32>
    %5 = arith.mulf %3, %4 : vector<2x8x128xf32>
    %6 = arith.mulf %3, %3 : vector<2x8x128xf32>
    %7 = arith.addf %6, %4 : vector<2x8x128xf32>
    %c0_6 = arith.constant 0 : index
    %c0_7 = arith.constant 0 : index
    %c0_8 = arith.constant 0 : index
    %8 = vector.load %arg4[%c0_6, %c0_7, %c0_8] : memref<1x2x128xf32, #tpu.memory_space<vmem>>, vector<1x2x128xf32>
    %9 = vector.shape_cast %8 : vector<1x2x128xf32> to vector<2x128xf32>
    %cst = arith.constant dense<0.000000e+00> : vector<2x128xf32>
    %10 = vector.multi_reduction <add>, %5, %cst [1] : vector<2x8x128xf32> to vector<2x128xf32>
    %11 = arith.addf %9, %10 : vector<2x128xf32>
    %c0_9 = arith.constant 0 : index
    %c0_10 = arith.constant 0 : index
    %c0_11 = arith.constant 0 : index
    %12 = vector.load %arg4[%c0_9, %c0_10, %c0_11] : memref<1x2x128xf32, #tpu.memory_space<vmem>>, vector<1x2x128xf32>
    %13 = vector.shape_cast %12 : vector<1x2x128xf32> to vector<2x128xf32>
    %14 = vector.shape_cast %11 : vector<2x128xf32> to vector<1x2x128xf32>
    tpu.vector_store %arg4[%c0_9, %c0_10, %c0_11], %14 {strides = array<i32>} : memref<1x2x128xf32, #tpu.memory_space<vmem>>, vector<1x2x128xf32>,
    %c0_12 = arith.constant 0 : index
    %c0_13 = arith.constant 0 : index
    %c0_14 = arith.constant 0 : index
    %15 = vector.load %arg5[%c0_12, %c0_13, %c0_14] : memref<1x2x128xf32, #tpu.memory_space<vmem>>, vector<1x2x128xf32>
    %16 = vector.shape_cast %15 : vector<1x2x128xf32> to vector<2x128xf32>
    %cst_15 = arith.constant dense<0.000000e+00> : vector<2x128xf32>
    %17 = vector.multi_reduction <add>, %7, %cst_15 [1] : vector<2x8x128xf32> to vector<2x128xf32>
    %18 = arith.addf %16, %17 : vector<2x128xf32>
    %c0_16 = arith.constant 0 : index
    %c0_17 = arith.constant 0 : index
    %c0_18 = arith.constant 0 : index
    %19 = vector.load %arg5[%c0_16, %c0_17, %c0_18] : memref<1x2x128xf32, #tpu.memory_space<vmem>>, vector<1x2x128xf32>
    %20 = vector.shape_cast %19 : vector<1x2x128xf32> to vector<2x128xf32>
    %21 = vector.shape_cast %18 : vector<2x128xf32> to vector<1x2x128xf32>
    tpu.vector_store %arg5[%c0_16, %c0_17, %c0_18], %21 {strides = array<i32>} : memref<1x2x128xf32, #tpu.memory_space<vmem>>, vector<1x2x128xf32>,
    return
  }
  func.func @transform_0(%arg0: i32, %arg1: i32) -> (i32, i32, i32) {
    %c1_i32 = arith.constant 1 : i32
    %0 = arith.muli %arg0, %c1_i32 : i32
    %1 = arith.addi %0, %arg1 : i32
    %c0_i32 = arith.constant 0 : i32
    %c0_i32_0 = arith.constant 0 : i32
    %c0_i32_1 = arith.constant 0 : i32
    return %c0_i32, %1, %c0_i32_0 : i32, i32, i32
  }
  func.func @transform_1(%arg0: i32, %arg1: i32) -> (i32, i32, i32) {
    %c1_i32 = arith.constant 1 : i32
    %0 = arith.muli %arg0, %c1_i32 : i32
    %1 = arith.addi %0, %arg1 : i32
    %c0_i32 = arith.constant 0 : i32
    %c0_i32_0 = arith.constant 0 : i32
    %c0_i32_1 = arith.constant 0 : i32
    return %c0_i32, %1, %c0_i32_0 : i32, i32, i32
  }
  func.func @transform_2(%arg0: i32, %arg1: i32) -> (i32, i32, i32) {
    %c0_i32 = arith.constant 0 : i32
    %c0_i32_0 = arith.constant 0 : i32
    %c0_i32_1 = arith.constant 0 : i32
    return %arg0, %c0_i32, %c0_i32_0 : i32, i32, i32
  }
  func.func @transform_3(%arg0: i32, %arg1: i32) -> (i32, i32, i32) {
    %c0_i32 = arith.constant 0 : i32
    %c0_i32_0 = arith.constant 0 : i32
    %c0_i32_1 = arith.constant 0 : i32
    return %arg0, %c0_i32, %c0_i32_0 : i32, i32, i32
  }
}

</mosaic_0001>

<llo_original>
// kernel: iou_loss.1
$region0: #{iou_loss.1}
  #allocation0 [shape = 'u32[]', space=smem, size = 0x4, offset = 0x4, fixed_abs, tag = 'smem constant byte address 0x4 - core index']
  #allocation1 [shape = 'u32[144,128]{1,0:T(1,128)}', space=vmem, size = 0x12000, scoped, tag = 'internal scratch']
  %s0 = inlined_call_operand.vmem [shape: f32[2,8,128], index: 0, kind: input, shape index: {}]
  %s1 = inlined_call_operand.vmem [shape: f32[2,8,128], index: 1, kind: input, shape index: {}]
  %s2 = inlined_call_operand.vmem [shape: f32[1,2,128], index: 2, kind: output, shape index: {0}]
  %s3 = inlined_call_operand.vmem [shape: f32[1,2,128], index: 3, kind: output, shape index: {1}]
  %4 = xla_tuple %s2, %s3
  %s5 = sld [smem:[#allocation0]]
  $region30: #{iou_loss.1} parent=0
    _
  %s7 = ssub.s32 1, %s5
  %s8 = scalar_select 0, %s7, %s5
  // Predicated region
  $region2: #{iou_loss.1} parent=0 // pred_check
    _
  $region3: #{iou_loss.1} parent=0 // pred_check_branch
    %10 = sbr.rel (0) target = $region5
  $region4: #{iou_loss.1} parent=0 // pred_region
    %s11 = sadd.s32 0, 0
    %p12 = scmp.lt.s32.totalorder %s11, 0
    %s13 = scalar_select %p12, %s11, 0
    %s14 = smul.addr %s13, 8
    %s15 = scalar_lea.vmem %s0, %s14
    %s16 = sadd.s32 0, 0
  $region5: #{iou_loss.1} parent=0 // pred_fallthru
    _
  // Predicated region
  $region6: #{iou_loss.1} parent=0 // pred_check
    _
  $region7: #{iou_loss.1} parent=0 // pred_check_branch
    %18 = sbr.rel (0) target = $region9
  $region8: #{iou_loss.1} parent=0 // pred_region
    %s19 = sadd.s32 0, 0
    %p20 = scmp.lt.s32.totalorder %s19, 0
    %s21 = scalar_select %p20, %s19, 0
    %s22 = smul.addr %s21, 8
    %s23 = scalar_lea.vmem %s1, %s22
    %s24 = sadd.s32 0, 0
  $region9: #{iou_loss.1} parent=0 // pred_fallthru
    _
  %s25 = sadd.s32 0, 0
  %p26 = scmp.lt.s32.totalorder %s25, 0
  %s27 = scalar_select %p26, %s25, 0
  %s28 = smul.addr %s27, 8
  %s29 = scalar_lea.vmem %s0, %s28
  %s30 = sadd.s32 0, 0
  %p31 = scmp.lt.s32.totalorder %s30, 0
  %s32 = scalar_select %p31, %s30, 0
  %s33 = smul.addr %s32, 8
  %s34 = scalar_lea.vmem %s1, %s33
  %s35 = sadd.s32 0, 0
  %p36 = scmp.lt.s32.totalorder %s35, 0
  %s37 = scalar_select %p36, %s35, 0
  %s38 = smul.addr %s37, 8
  %s39 = scalar_lea.vmem %s0, %s38
  %s40 = sadd.s32 0, 0
  %s41 = sadd.s32 0, 0
  %p42 = scmp.lt.s32.totalorder %s41, 0
  %s43 = scalar_select %p42, %s41, 0
  %s44 = smul.addr %s43, 8
  %s45 = scalar_lea.vmem %s1, %s44
  %s46 = sadd.s32 0, 0
  %p47 = scmp.eq.s32.totalorder 0, 0
  // Predicated region
  $region10: #{iou_loss.1} parent=0 // pred_check
    %p48 = pneg %p47
  $region11: #{iou_loss.1} parent=0 // pred_check_branch
    %50 = sbr.rel (%p48) target = $region13
  $region12: #{iou_loss.1} parent=0 // pred_region
    %51 = vst [vmem:[%s2] sm:$0x3] 0.0
    %52 = vst [vmem:[%s3] sm:$0x3] 0.0
  $region13: #{iou_loss.1} parent=0 // pred_fallthru
    _
  %v53 = vld [vmem:[%s39] sm:$0xff]
  %v54 = vld [vmem:[%s39 + $0x8] sm:$0xff]
  %v55 = vld [vmem:[%s45] sm:$0xff]
  %v56 = vld [vmem:[%s45 + $0x8] sm:$0xff]
  %v57 = vmul.f32 %v53, %v55
  %v58 = vmul.f32 %v54, %v56
  %v59 = vmul.f32 %v53, %v53
  %v60 = vmul.f32 %v54, %v54
  %v61 = vadd.f32 %v59, %v55
  %v62 = vadd.f32 %v60, %v56
  %v63 = vld [vmem:[%s2] sm:$0x3]
  %v64 = vrot.slane %v57, 4
  %v65 = vadd.f32 %v57, %v64
  %v66 = vrot.slane %v65, 2
  %v67 = vadd.f32 %v65, %v66
  %v68 = vrot.slane %v67, 1
  %v69 = vadd.f32 %v67, %v68
  %v70 = vrot.slane %v58, 4
  %v71 = vadd.f32 %v58, %v70
  %v72 = vrot.slane %v71, 2
  %v73 = vadd.f32 %v71, %v72
  %v74 = vrot.slane %v73, 1
  %v75 = vadd.f32 %v73, %v74
  %vm78 = vcmask 1041409
  %v79 = vsel %vm78, %v75, %v69
  %v81 = vadd.f32 %v63, %v79
  %82 = vst [vmem:[%s2] sm:$0x3] %v81
  %v83 = vld [vmem:[%s3] sm:$0x3]
  %v84 = vrot.slane %v61, 4
  %v85 = vadd.f32 %v61, %v84
  %v86 = vrot.slane %v85, 2
  %v87 = vadd.f32 %v85, %v86
  %v88 = vrot.slane %v87, 1
  %v89 = vadd.f32 %v87, %v88
  %v90 = vrot.slane %v62, 4
  %v91 = vadd.f32 %v62, %v90
  %v92 = vrot.slane %v91, 2
  %v93 = vadd.f32 %v91, %v92
  %v94 = vrot.slane %v93, 1
  %v95 = vadd.f32 %v93, %v94
  %v98 = vsel %vm78, %v95, %v89
  %v100 = vadd.f32 %v83, %v98
  %101 = vst [vmem:[%s3] sm:$0x3] %v100
  // Predicated region
  $region14: #{iou_loss.1} parent=0 // pred_check
    _
  $region15: #{iou_loss.1} parent=0 // pred_check_branch
    %103 = sbr.rel (0) target = $region17
  $region16: #{iou_loss.1} parent=0 // pred_region
    _
  $region17: #{iou_loss.1} parent=0 // pred_fallthru
    _
  // Predicated region
  $region18: #{iou_loss.1} parent=0 // pred_check
    _
  $region19: #{iou_loss.1} parent=0 // pred_check_branch
    %105 = sbr.rel (0) target = $region21
  $region20: #{iou_loss.1} parent=0 // pred_region
    _
  $region21: #{iou_loss.1} parent=0 // pred_fallthru
    _
  // Predicated region
  $region22: #{iou_loss.1} parent=0 // pred_check
    _
  $region23: #{iou_loss.1} parent=0 // pred_check_branch
    %107 = sbr.rel (0) target = $region25
  $region24: #{iou_loss.1} parent=0 // pred_region
    _
  $region25: #{iou_loss.1} parent=0 // pred_fallthru
    _
  // Predicated region
  $region26: #{iou_loss.1} parent=0 // pred_check
    _
  $region27: #{iou_loss.1} parent=0 // pred_check_branch
    %109 = sbr.rel (0) target = $region29
  $region28: #{iou_loss.1} parent=0 // pred_region
    _
  $region29: #{iou_loss.1} parent=0 // pred_fallthru
    _

</llo_original>
